<compile_context>
chip_gen: v5e
topology: v5e:2x2
jax: 0.10.0
libtpu: 0.0.40
codegen_flags: <defaults>
</compile_context>

<pallas_src>
import jax
import jax.numpy as jnp
from jax.experimental import pallas as pl
from jax.experimental.pallas import tpu as pltpu


def _round_up(x, m):
    return (x + m - 1) // m * m


def _cdiv(a, b):
    return (a + b - 1) // b


# ---------------------------------------------------------------------------
# Kernels.  Grid = (M tiles ["parallel"], hidden tiles ["arbitrary"]).
# The hidden axis is the reduction axis of the second matmul: the accumulator
# (output tile or f32 scratch) is initialized at k == 0 and holds partial sums
# across k.  x / W1 / W2 arrive already in bf16; biases are f32.
# ---------------------------------------------------------------------------
def ffn_kernel_f32_out(x_ref, w1_ref, b1_ref, w2_ref, b2_ref, o_ref):
    """float32 output: accumulate directly into the resident output tile."""
    k = pl.program_id(1)

    @pl.when(k == 0)
    def _():
        o_ref[...] = jnp.broadcast_to(b2_ref[...], o_ref.shape)

    h = jnp.dot(x_ref[...], w1_ref[...], preferred_element_type=jnp.float32)
    h = jnp.maximum(h + b1_ref[...], 0.0)                      # f32 bias + ReLU
    # h is truncated to bf16 for the second MXU matmul; accumulation stays f32.
    o_ref[...] += jnp.dot(h.astype(jnp.bfloat16), w2_ref[...],
                          preferred_element_type=jnp.float32)


def ffn_kernel_scratch(x_ref, w1_ref, b1_ref, w2_ref, b2_ref, o_ref, acc_ref):
    """Generic output dtype: f32 VMEM accumulator, cast/store at k == last."""
    k = pl.program_id(1)

    @pl.when(k == 0)
    def _():
        acc_ref[...] = jnp.zeros_like(acc_ref)

    h = jnp.dot(x_ref[...], w1_ref[...], preferred_element_type=jnp.float32)
    h = jnp.maximum(h + b1_ref[...], 0.0)
    acc_ref[...] += jnp.dot(h.astype(jnp.bfloat16), w2_ref[...],
                            preferred_element_type=jnp.float32)

    @pl.when(k == pl.num_programs(1) - 1)
    def _():
        o_ref[...] = (acc_ref[...] + b2_ref[...]).astype(o_ref.dtype)


# ---------------------------------------------------------------------------
# Tiling / VMEM helpers.
# ---------------------------------------------------------------------------
def _pick_hidden_tile(hidden, tile_h):
    """Return (th, hidden_pad): prefer 256-, then 128-aligned divisors of
    `hidden`; otherwise zero-pad hidden to a 128-aligned tile multiple."""
    tile_h = max(128, tile_h)
    for align in (256, 128):
        start = tile_h // align * align
        for cand in range(start, align - 1, -align):
            if hidden % cand == 0:
                return cand, hidden
    th = max(128, tile_h // 128 * 128)
    return th, _round_up(hidden, th)


def _vmem_estimate(tm, th, dmodel, out_itemsize, use_scratch):
    """Double-buffered tile working set + accumulator + h temp (bytes)."""
    return (2 * tm * dmodel * 2               # x tile (bf16)
            + 2 * dmodel * th * 2             # W1 chunk (bf16)
            + 2 * th * 4                      # b1 chunk (f32)
            + 2 * th * dmodel * 2             # W2 chunk (bf16)
            + 2 * dmodel * 4                  # b2 (f32)
            + 2 * tm * dmodel * out_itemsize  # out tile
            + (tm * dmodel * 4 if use_scratch else 0)   # f32 accumulator
            + tm * th * 4)                    # compiler temp for h (f32)


def feed_forward_network(x, w1, b1, w2, b2, *, tile_m=512, tile_h=512):
    """y = relu(x @ w1 + b1) @ w2 + b2.

    x: (..., dmodel); w1: (dmodel, hidden); b1: (hidden,);
    w2: (hidden, dmodel); b2: (dmodel,).
    """
    orig_shape = x.shape
    orig_dtype = x.dtype
    dmodel, hidden = w1.shape
    assert w2.shape == (hidden, dmodel)

    x2d = x.reshape(-1, dmodel)
    M = x2d.shape[0]

    out_itemsize = jnp.dtype(orig_dtype).itemsize
    use_scratch = jnp.dtype(orig_dtype) != jnp.dtype(jnp.float32)

    # ---- row (M) tiling ----------------------------------------------------
    tm = min(tile_m, _round_up(M, 16))
    # Megacore (v7x): give the "parallel" axis >= 2 tiles when M is large.
    if _cdiv(M, tm) == 1 and M >= 512:
        tm = _round_up(_cdiv(M, 2), 16)

    # ---- hidden tiling (always bounded, never full-width fallback) ---------
    th, hidden_pad = _pick_hidden_tile(hidden, tile_h)

    # ---- VMEM budget: query chip, keep headroom, shrink tiles to fit -------
    try:
        info = pltpu.get_tpu_info()
        vmem_cap = int(getattr(info, "vmem_capacity_bytes", 128 << 20))
    except Exception:  # pragma: no cover - conservative fallback
        vmem_cap = 128 << 20
    vmem_budget = int(vmem_cap * 0.85)        # headroom for internal scratch

    while _vmem_estimate(tm, th, dmodel, out_itemsize, use_scratch) > vmem_budget:
        if th > 256:
            th = max(256, (th // 2) // 128 * 128)
            hidden_pad = _round_up(hidden, th)
        elif tm > 16:
            tm = max(16, _round_up(tm // 2, 16))
        else:
            break

    M_pad = _round_up(M, tm)
    n_m = M_pad // tm
    n_h = hidden_pad // th

    # ---- prepare operands: bf16 matmul inputs, f32 biases, zero padding ----
    if M_pad != M:
        x2d = jnp.pad(x2d, ((0, M_pad - M), (0, 0)))
    x2d = x2d.astype(jnp.bfloat16)

    w1b = w1.astype(jnp.bfloat16)
    w2b = w2.astype(jnp.bfloat16)
    b1f = b1.astype(jnp.float32)
    if hidden_pad != hidden:
        # zero cols of W1 / zero b1 -> relu(0)=0; zero rows of W2 -> 0 contribution
        w1b = jnp.pad(w1b, ((0, 0), (0, hidden_pad - hidden)))
        w2b = jnp.pad(w2b, ((0, hidden_pad - hidden), (0, 0)))
        b1f = jnp.pad(b1f, (0, hidden_pad - hidden))
    b1_2d = b1f.reshape(1, hidden_pad)
    b2_2d = b2.astype(jnp.float32).reshape(1, dmodel)

    est = _vmem_estimate(tm, th, dmodel, out_itemsize, use_scratch)
    vmem_limit = int(min(max(est + (16 << 20), 32 << 20), vmem_budget))

    cost = pl.CostEstimate(
        flops=4 * M_pad * dmodel * hidden_pad,
        transcendentals=0,
        bytes_accessed=(M_pad * dmodel * 2                     # x (bf16)
                        + M_pad * dmodel * out_itemsize        # out
                        + n_m * (dmodel * hidden_pad * 2       # W1, streamed per M tile
                                 + hidden_pad * dmodel * 2     # W2, streamed per M tile
                                 + (hidden_pad + dmodel) * 4)))  # biases

    kernel = ffn_kernel_scratch if use_scratch else ffn_kernel_f32_out
    scratch_shapes = ([pltpu.VMEM((tm, dmodel), jnp.float32)]
                      if use_scratch else [])

    out2d = pl.pallas_call(
        kernel,
        out_shape=jax.ShapeDtypeStruct((M_pad, dmodel), orig_dtype),
        grid_spec=pltpu.PrefetchScalarGridSpec(
            num_scalar_prefetch=0,
            grid=(n_m, n_h),                                   # reduction axis last
            in_specs=[
                pl.BlockSpec((tm, dmodel), lambda i, k: (i, 0)),   # x tile (resident over k)
                pl.BlockSpec((dmodel, th), lambda i, k: (0, k)),   # W1 chunk
                pl.BlockSpec((1, th),      lambda i, k: (0, k)),   # b1 chunk
                pl.BlockSpec((th, dmodel), lambda i, k: (k, 0)),   # W2 chunk
                pl.BlockSpec((1, dmodel),  lambda i, k: (0, 0)),   # b2
            ],
            out_specs=pl.BlockSpec((tm, dmodel), lambda i, k: (i, 0)),
            scratch_shapes=scratch_shapes,
        ),
        compiler_params=pltpu.CompilerParams(
            dimension_semantics=("parallel", "arbitrary"),
            vmem_limit_bytes=vmem_limit),
        cost_estimate=cost,
    )(x2d, w1b, b1_2d, w2b, b2_2d)

    if M_pad != M:
        out2d = out2d[:M]
    return out2d.reshape(orig_shape)


if __name__ == "__main__":
    # Small shapes consistent with the module: dmodel=128, expand=4 -> hidden=512.
    batch, seq, dmodel, expand = 2, 8, 128, 4
    hidden = dmodel * expand

    key = jax.random.PRNGKey(0)
    kx, kw1, kb1, kw2, kb2 = jax.random.split(key, 5)

    x = jax.random.normal(kx, (batch, seq, dmodel), dtype=jnp.float32)

    # Deterministic init mimicking nn.Linear's uniform(-1/sqrt(in), 1/sqrt(in)).
    lim1 = 1.0 / jnp.sqrt(dmodel)
    lim2 = 1.0 / jnp.sqrt(hidden)
    # Stored as (in, out) = transpose of PyTorch's (out, in) weight layout.
    w1 = jax.random.uniform(kw1, (dmodel, hidden), jnp.float32, -lim1, lim1)
    b1 = jax.random.uniform(kb1, (hidden,), jnp.float32, -lim1, lim1)
    w2 = jax.random.uniform(kw2, (hidden, dmodel), jnp.float32, -lim2, lim2)
    b2 = jax.random.uniform(kb2, (dmodel,), jnp.float32, -lim2, lim2)

    out = feed_forward_network(x, w1, b1, w2, b2)
    out = jax.block_until_ready(out)

    # Pure-f32 reference; kernel matmuls run in bf16 on the MXU with f32
    # accumulation, so compare with a bf16-appropriate tolerance.
    ref = jnp.maximum(x @ w1 + b1, 0.0) @ w2 + b2
    assert out.shape == (batch, seq, dmodel)
    err = float(jnp.max(jnp.abs(out - ref)))
    assert jnp.allclose(out, ref, atol=5e-2, rtol=5e-2), f"max abs err {err}"

    print("KERNEL_OK")
</pallas_src>

<mosaic_0001>
module attributes {stable_mosaic.version = 11 : i64} {
  func.func @ffn_kernel_f32_out(%arg0: i32, %arg1: i32, %arg2: memref<16x128xbf16, #tpu.memory_space<vmem>>, %arg3: memref<128x512xbf16, #tpu.memory_space<vmem>>, %arg4: memref<1x512xf32, #tpu.memory_space<vmem>>, %arg5: memref<512x128xbf16, #tpu.memory_space<vmem>>, %arg6: memref<1x128xf32, #tpu.memory_space<vmem>>, %arg7: memref<16x128xf32, #tpu.memory_space<vmem>>) attributes {dimension_semantics = [#tpu.dimension_semantics<parallel>, #tpu.dimension_semantics<arbitrary>], iteration_bounds = array<i64: 1, 1>, scalar_prefetch = 0 : i64, scratch_operands = 0 : i64, tpu.core_type = #tpu.core_type<tc>, window_params = [{transform_indices = @transform_0, window_bounds = array<i64: 16, 128>}, {transform_indices = @transform_1, window_bounds = array<i64: 128, 512>}, {transform_indices = @transform_2, window_bounds = array<i64: 1, 512>}, {transform_indices = @transform_3, window_bounds = array<i64: 512, 128>}, {pipeline_mode = #tpu.pipeline_mode<synchronous>, transform_indices = @transform_4, window_bounds = array<i64: 1, 128>}, {transform_indices = @transform_5, window_bounds = array<i64: 16, 128>}]} {
    %c0_i32 = arith.constant 0 : i32
    %0 = arith.cmpi eq, %arg1, %c0_i32 : i32
    %1 = arith.extui %0 : i1 to i32
    %c0_i32_0 = arith.constant 0 : i32
    %2 = arith.cmpi ne, %1, %c0_i32_0 : i32
    scf.if %2 {
      %c0_14 = arith.constant 0 : index
      %c0_15 = arith.constant 0 : index
      %17 = vector.load %arg6[%c0_14, %c0_15] : memref<1x128xf32, #tpu.memory_space<vmem>>, vector<1x128xf32>
      %18 = vector.shape_cast %17 : vector<1x128xf32> to vector<1x128xf32>
      %19 = vector.broadcast %18 : vector<1x128xf32> to vector<16x128xf32>
      %c0_16 = arith.constant 0 : index
      %c0_17 = arith.constant 0 : index
      %20 = vector.load %arg7[%c0_16, %c0_17] : memref<16x128xf32, #tpu.memory_space<vmem>>, vector<16x128xf32>
      tpu.vector_store %arg7[%c0_16, %c0_17], %19 {strides = array<i32>} : memref<16x128xf32, #tpu.memory_space<vmem>>, vector<16x128xf32>,
    } else {
    }
    %c0 = arith.constant 0 : index
    %c0_1 = arith.constant 0 : index
    %3 = vector.load %arg2[%c0, %c0_1] : memref<16x128xbf16, #tpu.memory_space<vmem>>, vector<16x128xbf16>
    %c0_2 = arith.constant 0 : index
    %c0_3 = arith.constant 0 : index
    %4 = vector.load %arg3[%c0_2, %c0_3] : memref<128x512xbf16, #tpu.memory_space<vmem>>, vector<128x512xbf16>
    %cst = arith.constant dense<0.000000e+00> : vector<16x512xf32>
    %5 = tpu.matmul %3, %4, %cst {dimension_numbers = #tpu.dot_dimension_numbers<[1], [0], [0], [1], [0, 0, 1, 1], [], []>} : vector<16x128xbf16>, vector<128x512xbf16>, vector<16x512xf32> -> vector<16x512xf32>
    %c0_4 = arith.constant 0 : index
    %c0_5 = arith.constant 0 : index
    %6 = vector.load %arg4[%c0_4, %c0_5] : memref<1x512xf32, #tpu.memory_space<vmem>>, vector<1x512xf32>
    %7 = vector.broadcast %6 : vector<1x512xf32> to vector<16x512xf32>
    %8 = arith.addf %5, %7 : vector<16x512xf32>
    %cst_6 = arith.constant 0.000000e+00 : f32
    %9 = vector.broadcast %cst_6 : f32 to vector<16x512xf32>
    %10 = arith.maximumf %8, %9 : vector<16x512xf32>
    %c0_7 = arith.constant 0 : index
    %c0_8 = arith.constant 0 : index
    %11 = vector.load %arg7[%c0_7, %c0_8] : memref<16x128xf32, #tpu.memory_space<vmem>>, vector<16x128xf32>
    %12 = arith.truncf %10 : vector<16x512xf32> to vector<16x512xbf16>
    %c0_9 = arith.constant 0 : index
    %c0_10 = arith.constant 0 : index
    %13 = vector.load %arg5[%c0_9, %c0_10] : memref<512x128xbf16, #tpu.memory_space<vmem>>, vector<512x128xbf16>
    %cst_11 = arith.constant dense<0.000000e+00> : vector<16x128xf32>
    %14 = tpu.matmul %12, %13, %cst_11 {dimension_numbers = #tpu.dot_dimension_numbers<[1], [0], [0], [1], [0, 0, 1, 1], [], []>} : vector<16x512xbf16>, vector<512x128xbf16>, vector<16x128xf32> -> vector<16x128xf32>
    %15 = arith.addf %11, %14 : vector<16x128xf32>
    %c0_12 = arith.constant 0 : index
    %c0_13 = arith.constant 0 : index
    %16 = vector.load %arg7[%c0_12, %c0_13] : memref<16x128xf32, #tpu.memory_space<vmem>>, vector<16x128xf32>
    tpu.vector_store %arg7[%c0_12, %c0_13], %15 {strides = array<i32>} : memref<16x128xf32, #tpu.memory_space<vmem>>, vector<16x128xf32>,
    return
  }
  func.func @transform_0(%arg0: i32, %arg1: i32) -> (i32, i32) {
    %c0_i32 = arith.constant 0 : i32
    %c0_i32_0 = arith.constant 0 : i32
    return %arg0, %c0_i32 : i32, i32
  }
  func.func @transform_1(%arg0: i32, %arg1: i32) -> (i32, i32) {
    %c0_i32 = arith.constant 0 : i32
    %c0_i32_0 = arith.constant 0 : i32
    return %c0_i32, %arg1 : i32, i32
  }
  func.func @transform_2(%arg0: i32, %arg1: i32) -> (i32, i32) {
    %c0_i32 = arith.constant 0 : i32
    %c0_i32_0 = arith.constant 0 : i32
    return %c0_i32, %arg1 : i32, i32
  }
  func.func @transform_3(%arg0: i32, %arg1: i32) -> (i32, i32) {
    %c0_i32 = arith.constant 0 : i32
    %c0_i32_0 = arith.constant 0 : i32
    return %arg1, %c0_i32 : i32, i32
  }
  func.func @transform_4(%arg0: i32, %arg1: i32) -> (i32, i32) {
    %c0_i32 = arith.constant 0 : i32
    %c0_i32_0 = arith.constant 0 : i32
    %c0_i32_1 = arith.constant 0 : i32
    return %c0_i32, %c0_i32_0 : i32, i32
  }
  func.func @transform_5(%arg0: i32, %arg1: i32) -> (i32, i32) {
    %c0_i32 = arith.constant 0 : i32
    %c0_i32_0 = arith.constant 0 : i32
    return %arg0, %c0_i32 : i32, i32
  }
}

</mosaic_0001>

<llo_original>
// kernel: tpu_custom_call.1
$region0: #{tpu_custom_call.1}
  #allocation0 [shape = 'u32[]', space=smem, size = 0x4, offset = 0x4, fixed_abs, tag = 'smem constant byte address 0x4 - core index']
  #allocation1 [shape = 'u32[72,128]{1,0:T(1,128)}', space=vmem, size = 0x9000, scoped, tag = 'internal scratch']
  %s0 = inlined_call_operand.hbm [shape: bf16[16,128], index: 0, kind: input, shape index: {}]
  %s1 = inlined_call_operand.hbm [shape: bf16[128,512], index: 1, kind: input, shape index: {}]
  %s2 = inlined_call_operand.hbm [shape: f32[1,512], index: 2, kind: input, shape index: {}]
  %s3 = inlined_call_operand.hbm [shape: bf16[512,128], index: 3, kind: input, shape index: {}]
  %s4 = inlined_call_operand.vmem [shape: f32[1,128], index: 4, kind: input, shape index: {}]
  %s5 = inlined_call_operand.hbm [shape: f32[16,128], index: 5, kind: output, shape index: {}]
  %s6 = sld [smem:[#allocation0]]
  $region50: #{tpu_custom_call.1} parent=0
    _
  %s8 = ssub.s32 1, %s6
  %s9 = scalar_select 0, %s8, %s6
  $region1: #{tpu_custom_call.1} parent=0
    #allocation2 [shape = 'u8[4096]{0}', space=vmem, size = 0x1000, scoped, tag = 'input window, operand 0, single buffered']
    #allocation3 [shape = 's32[1]{0}', space=sflag, size = 0x4, scoped, tag = 'scoped memory for tpu_custom_call.1']
    #allocation4 [shape = 's32[1]{0}', space=sflag, size = 0x4, scoped, tag = 'scoped memory for tpu_custom_call.1']
    #allocation5 [shape = 'u8[131072]{0}', space=vmem, size = 0x20000, scoped, tag = 'input window, operand 1, single buffered']
    #allocation6 [shape = 's32[1]{0}', space=sflag, size = 0x4, scoped, tag = 'scoped memory for tpu_custom_call.1']
    #allocation7 [shape = 'u8[2048]{0}', space=vmem, size = 0x800, scoped, tag = 'input window, operand 2, single buffered']
    #allocation8 [shape = 'u8[131072]{0}', space=vmem, size = 0x20000, scoped, tag = 'input window, operand 3, single buffered']
    #allocation9 [shape = 's32[1]{0}', space=sflag, size = 0x4, scoped, tag = 'scoped memory for tpu_custom_call.1']
    #allocation10 [shape = 'u8[8192]{0}', space=vmem, size = 0x2000, scoped, tag = 'output window, operand 0, single buffered']
    %10 = vsyncpa [#allocation3], 0
    %11 = vsyncpa [#allocation6], 0
    %12 = vsyncpa [#allocation9], 0
    %13 = vsyncpa [#allocation4], 0
    // Predicated region
    $region2: #{tpu_custom_call.1} parent=1 // pred_check
      _
    $region3: #{tpu_custom_call.1} parent=1 // pred_check_branch
      %15 = sbr.rel (0) target = $region5
    $region4: #{tpu_custom_call.1} parent=1 // pred_region
      %17 = vsyncadd [#allocation3], 0
      %s18 = sshll.u32 %s0, 4
      %s19 = int_to_ptr.hbm [resolvable:$true] %s18
      %s20 = sshll.u32 [#allocation2], 4
      %s21 = int_to_ptr.vmem [resolvable:$true] %s20
      %26 = dma.hbm_to_vmem [thread:$0]  %s19, 128, %s21, [#allocation3], 64, 64, 4
    $region5: #{tpu_custom_call.1} parent=1 // pred_fallthru
      _
    // Predicated region
    $region6: #{tpu_custom_call.1} parent=1 // pred_check
      _
    $region7: #{tpu_custom_call.1} parent=1 // pred_check_branch
      %28 = sbr.rel (0) target = $region9
    $region8: #{tpu_custom_call.1} parent=1 // pred_region
      %30 = vsyncadd [#allocation6], 0
      %s31 = sshll.u32 %s1, 4
      %s32 = int_to_ptr.hbm [resolvable:$true] %s31
      %s33 = sshll.u32 [#allocation5], 4
      %s34 = int_to_ptr.vmem [resolvable:$true] %s33
      %39 = dma.hbm_to_vmem [thread:$0]  %s32, 4096, %s34, [#allocation6], 256, 256, 16
    $region9: #{tpu_custom_call.1} parent=1 // pred_fallthru
      _
    // Predicated region
    $region10: #{tpu_custom_call.1} parent=1 // pred_check
      _
    $region11: #{tpu_custom_call.1} parent=1 // pred_check_branch
      %41 = sbr.rel (0) target = $region13
    $region12: #{tpu_custom_call.1} parent=1 // pred_region
      %43 = vsyncadd [#allocation6], 0
      %s45 = sshll.u32 %s2, 4
      %s46 = int_to_ptr.hbm [resolvable:$true] %s45
      %s47 = sshll.u32 [#allocation7], 4
      %s48 = int_to_ptr.vmem [resolvable:$true] %s47
      %50 = dma.hbm_to_vmem [thread:$0]  %s46, 64, %s48, [#allocation6]
    $region13: #{tpu_custom_call.1} parent=1 // pred_fallthru
      _
    // Predicated region
    $region14: #{tpu_custom_call.1} parent=1 // pred_check
      _
    $region15: #{tpu_custom_call.1} parent=1 // pred_check_branch
      %52 = sbr.rel (0) target = $region17
    $region16: #{tpu_custom_call.1} parent=1 // pred_region
      %54 = vsyncadd [#allocation9], 0
      %s55 = sshll.u32 %s3, 4
      %s56 = int_to_ptr.hbm [resolvable:$true] %s55
      %s57 = sshll.u32 [#allocation8], 4
      %s58 = int_to_ptr.vmem [resolvable:$true] %s57
      %63 = dma.hbm_to_vmem [thread:$0]  %s56, 4096, %s58, [#allocation9], 64, 64, 4
    $region17: #{tpu_custom_call.1} parent=1 // pred_fallthru
      _
    // Predicated region
    $region18: #{tpu_custom_call.1} parent=1 // pred_check
      _
    $region19: #{tpu_custom_call.1} parent=1 // pred_check_branch
      %65 = sbr.rel (0) target = $region21
    $region20: #{tpu_custom_call.1} parent=1 // pred_region
      _
    $region21: #{tpu_custom_call.1} parent=1 // pred_fallthru
      _
    // Predicated region
    $region22: #{tpu_custom_call.1} parent=1 // pred_check
      _
    $region23: #{tpu_custom_call.1} parent=1 // pred_check_branch
      %67 = sbr.rel (0) target = $region25
    $region24: #{tpu_custom_call.1} parent=1 // pred_region
      %69 = dma.done [#allocation3], 128
    $region25: #{tpu_custom_call.1} parent=1 // pred_fallthru
      _
    // Predicated region
    $region26: #{tpu_custom_call.1} parent=1 // pred_check
      _
    $region27: #{tpu_custom_call.1} parent=1 // pred_check_branch
      %71 = sbr.rel (0) target = $region29
    $region28: #{tpu_custom_call.1} parent=1 // pred_region
      %73 = dma.done [#allocation6], 4096
    $region29: #{tpu_custom_call.1} parent=1 // pred_fallthru
      _
    // Predicated region
    $region30: #{tpu_custom_call.1} parent=1 // pred_check
      _
    $region31: #{tpu_custom_call.1} parent=1 // pred_check_branch
      %75 = sbr.rel (0) target = $region33
    $region32: #{tpu_custom_call.1} parent=1 // pred_region
      %77 = dma.done [#allocation6], 64
    $region33: #{tpu_custom_call.1} parent=1 // pred_fallthru
      _
    // Predicated region
    $region34: #{tpu_custom_call.1} parent=1 // pred_check
      _
    $region35: #{tpu_custom_call.1} parent=1 // pred_check_branch
      %79 = sbr.rel (0) target = $region37
    $region36: #{tpu_custom_call.1} parent=1 // pred_region
      %81 = dma.done [#allocation9], 4096
    $region37: #{tpu_custom_call.1} parent=1 // pred_fallthru
      _
    %p82 = scmp.eq.s32.totalorder 0, 0
    // Predicated region
    $region38: #{tpu_custom_call.1} parent=1 // pred_check
      %p83 = pneg %p82
    $region39: #{tpu_custom_call.1} parent=1 // pred_check_branch
      %85 = sbr.rel (%p83) target = $region41
    $region40: #{tpu_custom_call.1} parent=1 // pred_region
      %v86 = vld [vmem:[%s4] sm:$0x1]
      %v88 = vperm.slane %v86, 0
      %90 = vst [vmem:[#allocation10] sm:$0xff] %v88
      %91 = vst [vmem:[#allocation10 + $0x8] sm:$0xff] %v88
    $region41: #{tpu_custom_call.1} parent=1 // pred_fallthru
      _
    %v92 = vld [vmem:[#allocation2] sm:$0xf]
    %v93 = vld [vmem:[#allocation2 + $0x4] sm:$0xf]
    %v94 = vld [vmem:[#allocation5] sm:$0xff]
    %v95 = vld [vmem:[#allocation5 + $0x8] sm:$0xff]
    %v96 = vld [vmem:[#allocation5 + $0x10] sm:$0xff]
    %v97 = vld [vmem:[#allocation5 + $0x18] sm:$0xff]
    %v98 = vld [vmem:[#allocation5 + $0x20] sm:$0xff]
    %v99 = vld [vmem:[#allocation5 + $0x28] sm:$0xff]
    %v100 = vld [vmem:[#allocation5 + $0x30] sm:$0xff]
    %v101 = vld [vmem:[#allocation5 + $0x38] sm:$0xff]
    %v102 = vld [vmem:[#allocation5 + $0x40] sm:$0xff]
    %v103 = vld [vmem:[#allocation5 + $0x48] sm:$0xff]
    %v104 = vld [vmem:[#allocation5 + $0x50] sm:$0xff]
    %v105 = vld [vmem:[#allocation5 + $0x58] sm:$0xff]
    %v106 = vld [vmem:[#allocation5 + $0x60] sm:$0xff]
    %v107 = vld [vmem:[#allocation5 + $0x68] sm:$0xff]
    %v108 = vld [vmem:[#allocation5 + $0x70] sm:$0xff]
    %v109 = vld [vmem:[#allocation5 + $0x78] sm:$0xff]
    %v110 = vld [vmem:[#allocation5 + $0x80] sm:$0xff]
    %v111 = vld [vmem:[#allocation5 + $0x88] sm:$0xff]
    %v112 = vld [vmem:[#allocation5 + $0x90] sm:$0xff]
    %v113 = vld [vmem:[#allocation5 + $0x98] sm:$0xff]
    %v114 = vld [vmem:[#allocation5 + $0xa0] sm:$0xff]
    %v115 = vld [vmem:[#allocation5 + $0xa8] sm:$0xff]
    %v116 = vld [vmem:[#allocation5 + $0xb0] sm:$0xff]
    %v117 = vld [vmem:[#allocation5 + $0xb8] sm:$0xff]
    %v118 = vld [vmem:[#allocation5 + $0xc0] sm:$0xff]
    %v119 = vld [vmem:[#allocation5 + $0xc8] sm:$0xff]
    %v120 = vld [vmem:[#allocation5 + $0xd0] sm:$0xff]
    %v121 = vld [vmem:[#allocation5 + $0xd8] sm:$0xff]
    %v122 = vld [vmem:[#allocation5 + $0xe0] sm:$0xff]
    %v123 = vld [vmem:[#allocation5 + $0xe8] sm:$0xff]
    %v124 = vld [vmem:[#allocation5 + $0xf0] sm:$0xff]
    %v125 = vld [vmem:[#allocation5 + $0xf8] sm:$0xff]
    %v126 = vld [vmem:[#allocation7] sm:$0xf]
    %v128 = vperm.slane %v126, 0
    %v129 = vperm.slane %v126, 1
    %v130 = vperm.slane %v126, 2
    %v131 = vperm.slane %v126, 3
    %v138 = vunpack.c.l.b16 %v92
    %v139 = vunpack.c.l.b16 %v93
    %v140 = vpack.c.b16 %v139, %v138
    %v174 = vunpack.c.l.b16 %v94
    %v175 = vunpack.c.h.b16 %v94
    %v176 = vunpack.c.l.b16 %v95
    %v177 = vunpack.c.h.b16 %v95
    %v178 = vunpack.c.l.b16 %v96
    %v179 = vunpack.c.h.b16 %v96
    %v180 = vunpack.c.l.b16 %v97
    %v181 = vunpack.c.h.b16 %v97
    %v182 = vunpack.c.l.b16 %v98
    %v183 = vunpack.c.h.b16 %v98
    %v184 = vunpack.c.l.b16 %v99
    %v185 = vunpack.c.h.b16 %v99
    %v186 = vunpack.c.l.b16 %v100
    %v187 = vunpack.c.h.b16 %v100
    %v188 = vunpack.c.l.b16 %v101
    %v189 = vunpack.c.h.b16 %v101
    %v190 = vunpack.c.l.b16 %v102
    %v191 = vunpack.c.h.b16 %v102
    %v192 = vunpack.c.l.b16 %v103
    %v193 = vunpack.c.h.b16 %v103
    %v194 = vunpack.c.l.b16 %v104
    %v195 = vunpack.c.h.b16 %v104
    %v196 = vunpack.c.l.b16 %v105
    %v197 = vunpack.c.h.b16 %v105
    %v198 = vunpack.c.l.b16 %v106
    %v199 = vunpack.c.h.b16 %v106
    %v200 = vunpack.c.l.b16 %v107
    %v201 = vunpack.c.h.b16 %v107
    %v202 = vunpack.c.l.b16 %v108
    %v203 = vunpack.c.h.b16 %v108
    %v204 = vunpack.c.l.b16 %v109
    %v205 = vunpack.c.h.b16 %v109
    %v206 = vunpack.c.l.b16 %v110
    %v207 = vunpack.c.h.b16 %v110
    %v208 = vunpack.c.l.b16 %v111
    %v209 = vunpack.c.h.b16 %v111
    %v210 = vunpack.c.l.b16 %v112
    %v211 = vunpack.c.h.b16 %v112
    %v212 = vunpack.c.l.b16 %v113
    %v213 = vunpack.c.h.b16 %v113
    %v214 = vunpack.c.l.b16 %v114
    %v215 = vunpack.c.h.b16 %v114
    %v216 = vunpack.c.l.b16 %v115
    %v217 = vunpack.c.h.b16 %v115
    %v218 = vunpack.c.l.b16 %v116
    %v219 = vunpack.c.h.b16 %v116
    %v220 = vunpack.c.l.b16 %v117
    %v221 = vunpack.c.h.b16 %v117
    %v222 = vunpack.c.l.b16 %v118
    %v223 = vunpack.c.h.b16 %v118
    %v224 = vunpack.c.l.b16 %v119
    %v225 = vunpack.c.h.b16 %v119
    %v226 = vunpack.c.l.b16 %v120
    %v227 = vunpack.c.h.b16 %v120
    %v228 = vunpack.c.l.b16 %v121
    %v229 = vunpack.c.h.b16 %v121
    %v230 = vunpack.c.l.b16 %v122
    %v231 = vunpack.c.h.b16 %v122
    %v232 = vunpack.c.l.b16 %v123
    %v233 = vunpack.c.h.b16 %v123
    %v234 = vunpack.c.l.b16 %v124
    %v235 = vunpack.c.h.b16 %v124
    %v236 = vunpack.c.l.b16 %v125
    %v237 = vunpack.c.h.b16 %v125
    %v238 = vpack.c.b16 %v178, %v174
    %v239 = vpack.c.b16 %v179, %v175
    %v240 = vpack.c.b16 %v180, %v176
    %v241 = vpack.c.b16 %v181, %v177
    %v242 = vpack.c.b16 %v186, %v182
    %v243 = vpack.c.b16 %v187, %v183
    %v244 = vpack.c.b16 %v188, %v184
    %v245 = vpack.c.b16 %v189, %v185
    %v246 = vpack.c.b16 %v194, %v190
    %v247 = vpack.c.b16 %v195, %v191
    %v248 = vpack.c.b16 %v196, %v192
    %v249 = vpack.c.b16 %v197, %v193
    %v250 = vpack.c.b16 %v202, %v198
    %v251 = vpack.c.b16 %v203, %v199
    %v252 = vpack.c.b16 %v204, %v200
    %v253 = vpack.c.b16 %v205, %v201
    %v254 = vpack.c.b16 %v210, %v206
    %v255 = vpack.c.b16 %v211, %v207
    %v256 = vpack.c.b16 %v212, %v208
    %v257 = vpack.c.b16 %v213, %v209
    %v258 = vpack.c.b16 %v218, %v214
    %v259 = vpack.c.b16 %v219, %v215
    %v260 = vpack.c.b16 %v220, %v216
    %v261 = vpack.c.b16 %v221, %v217
    %v262 = vpack.c.b16 %v226, %v222
    %v263 = vpack.c.b16 %v227, %v223
    %v264 = vpack.c.b16 %v228, %v224
    %v265 = vpack.c.b16 %v229, %v225
    %v266 = vpack.c.b16 %v234, %v230
    %v267 = vpack.c.b16 %v235, %v231
    %v268 = vpack.c.b16 %v236, %v232
    %v269 = vpack.c.b16 %v237, %v233
    %302 = vmatpush.bf16.msra.mxu0 %v266
    %303 = vmatpush.bf16.msra.mxu0 %v262
    %304 = vmatpush.bf16.msra.mxu0 %v258
    %305 = vmatpush.bf16.msra.mxu0 %v254
    %306 = vmatpush.bf16.msra.mxu0 %v250
    %307 = vmatpush.bf16.msra.mxu0 %v246
    %308 = vmatpush.bf16.msra.mxu0 %v242
    %309 = vmatpush.bf16.msra.mxu0 %v238
    %310 = vmatmul.bf16.gmra.mxu0 %v140
    %v311 = vpop.f32.mrf.mxu0
    %v312 = vadd.f32 %v128, %v311
    %v313 = vpop.f32.mrf.mxu0
    %v314 = vadd.f32 %v128, %v313
    %315 = vdwg.mxu0
    %316 = vmatpush.bf16.msra.mxu0 %v267
    %317 = vmatpush.bf16.msra.mxu0 %v263
    %318 = vmatpush.bf16.msra.mxu0 %v259
    %319 = vmatpush.bf16.msra.mxu0 %v255
    %320 = vmatpush.bf16.msra.mxu0 %v251
    %321 = vmatpush.bf16.msra.mxu0 %v247
    %322 = vmatpush.bf16.msra.mxu0 %v243
    %323 = vmatpush.bf16.msra.mxu0 %v239
    %324 = vmatmul.bf16.gmra.mxu0 %v140
    %v325 = vpop.f32.mrf.mxu0
    %v326 = vadd.f32 %v129, %v325
    %v327 = vpop.f32.mrf.mxu0
    %v328 = vadd.f32 %v129, %v327
    %329 = vdwg.mxu0
    %330 = vmatpush.bf16.msra.mxu0 %v268
    %331 = vmatpush.bf16.msra.mxu0 %v264
    %332 = vmatpush.bf16.msra.mxu0 %v260
    %333 = vmatpush.bf16.msra.mxu0 %v256
    %334 = vmatpush.bf16.msra.mxu0 %v252
    %335 = vmatpush.bf16.msra.mxu0 %v248
    %336 = vmatpush.bf16.msra.mxu0 %v244
    %337 = vmatpush.bf16.msra.mxu0 %v240
    %338 = vmatmul.bf16.gmra.mxu0 %v140
    %v339 = vpop.f32.mrf.mxu0
    %v340 = vadd.f32 %v130, %v339
    %v341 = vpop.f32.mrf.mxu0
    %v342 = vadd.f32 %v130, %v341
    %343 = vdwg.mxu0
    %344 = vmatpush.bf16.msra.mxu0 %v269
    %345 = vmatpush.bf16.msra.mxu0 %v265
    %346 = vmatpush.bf16.msra.mxu0 %v261
    %347 = vmatpush.bf16.msra.mxu0 %v257
    %348 = vmatpush.bf16.msra.mxu0 %v253
    %349 = vmatpush.bf16.msra.mxu0 %v249
    %350 = vmatpush.bf16.msra.mxu0 %v245
    %351 = vmatpush.bf16.msra.mxu0 %v241
    %352 = vmatmul.bf16.gmra.mxu0 %v140
    %v353 = vpop.f32.mrf.mxu0
    %v354 = vadd.f32 %v131, %v353
    %v355 = vpop.f32.mrf.mxu0
    %v356 = vadd.f32 %v131, %v355
    %357 = vdwg.mxu0
    %v358 = vmax.f32 %v312, 0.0
    %v359 = vmax.f32 %v326, 0.0
    %v360 = vmax.f32 %v340, 0.0
    %v361 = vmax.f32 %v354, 0.0
    %v362 = vmax.f32 %v314, 0.0
    %v363 = vmax.f32 %v328, 0.0
    %v364 = vmax.f32 %v342, 0.0
    %v365 = vmax.f32 %v356, 0.0
    %v366 = vld [vmem:[#allocation10] sm:$0xff]
    %v367 = vld [vmem:[#allocation10 + $0x8] sm:$0xff]
    %v368 = vpack.c.bf16 %v362, %v358
    %v369 = vpack.c.bf16 %v363, %v359
    %v370 = vpack.c.bf16 %v364, %v360
    %v371 = vpack.c.bf16 %v365, %v361
    %v372 = vld [vmem:[#allocation8] sm:$0xf]
    %v373 = vld [vmem:[#allocation8 + $0x4] sm:$0xf]
    %v374 = vld [vmem:[#allocation8 + $0x8] sm:$0xf]
    %v375 = vld [vmem:[#allocation8 + $0xc] sm:$0xf]
    %v376 = vld [vmem:[#allocation8 + $0x10] sm:$0xf]
    %v377 = vld [vmem:[#allocation8 + $0x14] sm:$0xf]
    %v378 = vld [vmem:[#allocation8 + $0x18] sm:$0xf]
    %v379 = vld [vmem:[#allocation8 + $0x1c] sm:$0xf]
    %v380 = vld [vmem:[#allocation8 + $0x20] sm:$0xf]
    %v381 = vld [vmem:[#allocation8 + $0x24] sm:$0xf]
    %v382 = vld [vmem:[#allocation8 + $0x28] sm:$0xf]
    %v383 = vld [vmem:[#allocation8 + $0x2c] sm:$0xf]
    %v384 = vld [vmem:[#allocation8 + $0x30] sm:$0xf]
    %v385 = vld [vmem:[#allocation8 + $0x34] sm:$0xf]
    %v386 = vld [vmem:[#allocation8 + $0x38] sm:$0xf]
    %v387 = vld [vmem:[#allocation8 + $0x3c] sm:$0xf]
    %v388 = vld [vmem:[#allocation8 + $0x40] sm:$0xf]
    %v389 = vld [vmem:[#allocation8 + $0x44] sm:$0xf]
    %v390 = vld [vmem:[#allocation8 + $0x48] sm:$0xf]
    %v391 = vld [vmem:[#allocation8 + $0x4c] sm:$0xf]
    %v392 = vld [vmem:[#allocation8 + $0x50] sm:$0xf]
    %v393 = vld [vmem:[#allocation8 + $0x54] sm:$0xf]
    %v394 = vld [vmem:[#allocation8 + $0x58] sm:$0xf]
    %v395 = vld [vmem:[#allocation8 + $0x5c] sm:$0xf]
    %v396 = vld [vmem:[#allocation8 + $0x60] sm:$0xf]
    %v397 = vld [vmem:[#allocation8 + $0x64] sm:$0xf]
    %v398 = vld [vmem:[#allocation8 + $0x68] sm:$0xf]
    %v399 = vld [vmem:[#allocation8 + $0x6c] sm:$0xf]
    %v400 = vld [vmem:[#allocation8 + $0x70] sm:$0xf]
    %v401 = vld [vmem:[#allocation8 + $0x74] sm:$0xf]
    %v402 = vld [vmem:[#allocation8 + $0x78] sm:$0xf]
    %v403 = vld [vmem:[#allocation8 + $0x7c] sm:$0xf]
    %v404 = vld [vmem:[#allocation8 + $0x80] sm:$0xf]
    %v405 = vld [vmem:[#allocation8 + $0x84] sm:$0xf]
    %v406 = vld [vmem:[#allocation8 + $0x88] sm:$0xf]
    %v407 = vld [vmem:[#allocation8 + $0x8c] sm:$0xf]
    %v408 = vld [vmem:[#allocation8 + $0x90] sm:$0xf]
    %v409 = vld [vmem:[#allocation8 + $0x94] sm:$0xf]
    %v410 = vld [vmem:[#allocation8 + $0x98] sm:$0xf]
    %v411 = vld [vmem:[#allocation8 + $0x9c] sm:$0xf]
    %v412 = vld [vmem:[#allocation8 + $0xa0] sm:$0xf]
    %v413 = vld [vmem:[#allocation8 + $0xa4] sm:$0xf]
    %v414 = vld [vmem:[#allocation8 + $0xa8] sm:$0xf]
    %v415 = vld [vmem:[#allocation8 + $0xac] sm:$0xf]
    %v416 = vld [vmem:[#allocation8 + $0xb0] sm:$0xf]
    %v417 = vld [vmem:[#allocation8 + $0xb4] sm:$0xf]
    %v418 = vld [vmem:[#allocation8 + $0xb8] sm:$0xf]
    %v419 = vld [vmem:[#allocation8 + $0xbc] sm:$0xf]
    %v420 = vld [vmem:[#allocation8 + $0xc0] sm:$0xf]
    %v421 = vld [vmem:[#allocation8 + $0xc4] sm:$0xf]
    %v422 = vld [vmem:[#allocation8 + $0xc8] sm:$0xf]
    %v423 = vld [vmem:[#allocation8 + $0xcc] sm:$0xf]
    %v424 = vld [vmem:[#allocation8 + $0xd0] sm:$0xf]
    %v425 = vld [vmem:[#allocation8 + $0xd4] sm:$0xf]
    %v426 = vld [vmem:[#allocation8 + $0xd8] sm:$0xf]
    %v427 = vld [vmem:[#allocation8 + $0xdc] sm:$0xf]
    %v428 = vld [vmem:[#allocation8 + $0xe0] sm:$0xf]
    %v429 = vld [vmem:[#allocation8 + $0xe4] sm:$0xf]
    %v430 = vld [vmem:[#allocation8 + $0xe8] sm:$0xf]
    %v431 = vld [vmem:[#allocation8 + $0xec] sm:$0xf]
    %v432 = vld [vmem:[#allocation8 + $0xf0] sm:$0xf]
    %v433 = vld [vmem:[#allocation8 + $0xf4] sm:$0xf]
    %v434 = vld [vmem:[#allocation8 + $0xf8] sm:$0xf]
    %v435 = vld [vmem:[#allocation8 + $0xfc] sm:$0xf]
    %v500 = vunpack.c.l.b16 %v372
    %v501 = vunpack.c.l.b16 %v373
    %v502 = vunpack.c.l.b16 %v374
    %v503 = vunpack.c.l.b16 %v375
    %v504 = vunpack.c.l.b16 %v376
    %v505 = vunpack.c.l.b16 %v377
    %v506 = vunpack.c.l.b16 %v378
    %v507 = vunpack.c.l.b16 %v379
    %v508 = vunpack.c.l.b16 %v380
    %v509 = vunpack.c.l.b16 %v381
    %v510 = vunpack.c.l.b16 %v382
    %v511 = vunpack.c.l.b16 %v383
    %v512 = vunpack.c.l.b16 %v384
    %v513 = vunpack.c.l.b16 %v385
    %v514 = vunpack.c.l.b16 %v386
    %v515 = vunpack.c.l.b16 %v387
    %v516 = vunpack.c.l.b16 %v388
    %v517 = vunpack.c.l.b16 %v389
    %v518 = vunpack.c.l.b16 %v390
    %v519 = vunpack.c.l.b16 %v391
    %v520 = vunpack.c.l.b16 %v392
    %v521 = vunpack.c.l.b16 %v393
    %v522 = vunpack.c.l.b16 %v394
    %v523 = vunpack.c.l.b16 %v395
    %v524 = vunpack.c.l.b16 %v396
    %v525 = vunpack.c.l.b16 %v397
    %v526 = vunpack.c.l.b16 %v398
    %v527 = vunpack.c.l.b16 %v399
    %v528 = vunpack.c.l.b16 %v400
    %v529 = vunpack.c.l.b16 %v401
    %v530 = vunpack.c.l.b16 %v402
    %v531 = vunpack.c.l.b16 %v403
    %v532 = vunpack.c.l.b16 %v404
    %v533 = vunpack.c.l.b16 %v405
    %v534 = vunpack.c.l.b16 %v406
    %v535 = vunpack.c.l.b16 %v407
    %v536 = vunpack.c.l.b16 %v408
    %v537 = vunpack.c.l.b16 %v409
    %v538 = vunpack.c.l.b16 %v410
    %v539 = vunpack.c.l.b16 %v411
    %v540 = vunpack.c.l.b16 %v412
    %v541 = vunpack.c.l.b16 %v413
    %v542 = vunpack.c.l.b16 %v414
    %v543 = vunpack.c.l.b16 %v415
    %v544 = vunpack.c.l.b16 %v416
    %v545 = vunpack.c.l.b16 %v417
    %v546 = vunpack.c.l.b16 %v418
    %v547 = vunpack.c.l.b16 %v419
    %v548 = vunpack.c.l.b16 %v420
    %v549 = vunpack.c.l.b16 %v421
    %v550 = vunpack.c.l.b16 %v422
    %v551 = vunpack.c.l.b16 %v423
    %v552 = vunpack.c.l.b16 %v424
    %v553 = vunpack.c.l.b16 %v425
    %v554 = vunpack.c.l.b16 %v426
    %v555 = vunpack.c.l.b16 %v427
    %v556 = vunpack.c.l.b16 %v428
    %v557 = vunpack.c.l.b16 %v429
    %v558 = vunpack.c.l.b16 %v430
    %v559 = vunpack.c.l.b16 %v431
    %v560 = vunpack.c.l.b16 %v432
    %v561 = vunpack.c.l.b16 %v433
    %v562 = vunpack.c.l.b16 %v434
    %v563 = vunpack.c.l.b16 %v435
    %v564 = vpack.c.b16 %v501, %v500
    %v565 = vpack.c.b16 %v503, %v502
    %v566 = vpack.c.b16 %v505, %v504
    %v567 = vpack.c.b16 %v507, %v506
    %v568 = vpack.c.b16 %v509, %v508
    %v569 = vpack.c.b16 %v511, %v510
    %v570 = vpack.c.b16 %v513, %v512
    %v571 = vpack.c.b16 %v515, %v514
    %v572 = vpack.c.b16 %v517, %v516
    %v573 = vpack.c.b16 %v519, %v518
    %v574 = vpack.c.b16 %v521, %v520
    %v575 = vpack.c.b16 %v523, %v522
    %v576 = vpack.c.b16 %v525, %v524
    %v577 = vpack.c.b16 %v527, %v526
    %v578 = vpack.c.b16 %v529, %v528
    %v579 = vpack.c.b16 %v531, %v530
    %v580 = vpack.c.b16 %v533, %v532
    %v581 = vpack.c.b16 %v535, %v534
    %v582 = vpack.c.b16 %v537, %v536
    %v583 = vpack.c.b16 %v539, %v538
    %v584 = vpack.c.b16 %v541, %v540
    %v585 = vpack.c.b16 %v543, %v542
    %v586 = vpack.c.b16 %v545, %v544
    %v587 = vpack.c.b16 %v547, %v546
    %v588 = vpack.c.b16 %v549, %v548
    %v589 = vpack.c.b16 %v551, %v550
    %v590 = vpack.c.b16 %v553, %v552
    %v591 = vpack.c.b16 %v555, %v554
    %v592 = vpack.c.b16 %v557, %v556
    %v593 = vpack.c.b16 %v559, %v558
    %v594 = vpack.c.b16 %v561, %v560
    %v595 = vpack.c.b16 %v563, %v562
    %628 = vmatpush.bf16.msra.mxu0 %v571
    %629 = vmatpush.bf16.msra.mxu0 %v570
    %630 = vmatpush.bf16.msra.mxu0 %v569
    %631 = vmatpush.bf16.msra.mxu0 %v568
    %632 = vmatpush.bf16.msra.mxu0 %v567
    %633 = vmatpush.bf16.msra.mxu0 %v566
    %634 = vmatpush.bf16.msra.mxu0 %v565
    %635 = vmatpush.bf16.msra.mxu0 %v564
    %636 = vmatmul.bf16.gmra.mxu0 %v368
    %v637 = vpop.f32.mrf.mxu0
    %v638 = vadd.f32 0.0, %v637
    %v639 = vpop.f32.mrf.mxu0
    %v640 = vadd.f32 0.0, %v639
    %641 = vdwg.mxu0
    %642 = vmatpush.bf16.msra.mxu0 %v579
    %643 = vmatpush.bf16.msra.mxu0 %v578
    %644 = vmatpush.bf16.msra.mxu0 %v577
    %645 = vmatpush.bf16.msra.mxu0 %v576
    %646 = vmatpush.bf16.msra.mxu0 %v575
    %647 = vmatpush.bf16.msra.mxu0 %v574
    %648 = vmatpush.bf16.msra.mxu0 %v573
    %649 = vmatpush.bf16.msra.mxu0 %v572
    %650 = vmatmul.bf16.gmra.mxu0 %v369
    %v651 = vpop.f32.mrf.mxu0
    %v652 = vadd.f32 %v638, %v651
    %v653 = vpop.f32.mrf.mxu0
    %v654 = vadd.f32 %v640, %v653
    %655 = vdwg.mxu0
    %656 = vmatpush.bf16.msra.mxu0 %v587
    %657 = vmatpush.bf16.msra.mxu0 %v586
    %658 = vmatpush.bf16.msra.mxu0 %v585
    %659 = vmatpush.bf16.msra.mxu0 %v584
    %660 = vmatpush.bf16.msra.mxu0 %v583
    %661 = vmatpush.bf16.msra.mxu0 %v582
    %662 = vmatpush.bf16.msra.mxu0 %v581
    %663 = vmatpush.bf16.msra.mxu0 %v580
    %664 = vmatmul.bf16.gmra.mxu0 %v370
    %v665 = vpop.f32.mrf.mxu0
    %v666 = vadd.f32 %v652, %v665
    %v667 = vpop.f32.mrf.mxu0
    %v668 = vadd.f32 %v654, %v667
    %669 = vdwg.mxu0
    %670 = vmatpush.bf16.msra.mxu0 %v595
    %671 = vmatpush.bf16.msra.mxu0 %v594
    %672 = vmatpush.bf16.msra.mxu0 %v593
    %673 = vmatpush.bf16.msra.mxu0 %v592
    %674 = vmatpush.bf16.msra.mxu0 %v591
    %675 = vmatpush.bf16.msra.mxu0 %v590
    %676 = vmatpush.bf16.msra.mxu0 %v589
    %677 = vmatpush.bf16.msra.mxu0 %v588
    %678 = vmatmul.bf16.gmra.mxu0 %v371
    %v679 = vpop.f32.mrf.mxu0
    %v680 = vadd.f32 %v666, %v679
    %v681 = vpop.f32.mrf.mxu0
    %v682 = vadd.f32 %v668, %v681
    %683 = vdwg.mxu0
    %v684 = vadd.f32 %v366, %v680
    %v685 = vadd.f32 %v367, %v682
    %686 = vst [vmem:[#allocation10] sm:$0xff] %v684
    %687 = vst [vmem:[#allocation10 + $0x8] sm:$0xff] %v685
    // Predicated region
    $region42: #{tpu_custom_call.1} parent=1 // pred_check
      _
    $region43: #{tpu_custom_call.1} parent=1 // pred_check_branch
      %689 = sbr.rel (0) target = $region45
    $region44: #{tpu_custom_call.1} parent=1 // pred_region
      %691 = vsyncadd [#allocation4], 0
      %s692 = sshll.u32 [#allocation10], 4
      %s693 = int_to_ptr.vmem [resolvable:$true] %s692
      %s694 = sshll.u32 %s5, 4
      %s695 = int_to_ptr.hbm [resolvable:$true] %s694
      %700 = dma.vmem_to_hbm [thread:$0]  %s693, 256, %s695, [#allocation4], 128, 128, 8
    $region45: #{tpu_custom_call.1} parent=1 // pred_fallthru
      _
    // Predicated region
    $region46: #{tpu_custom_call.1} parent=1 // pred_check
      _
    $region47: #{tpu_custom_call.1} parent=1 // pred_check_branch
      %702 = sbr.rel (0) target = $region49
    $region48: #{tpu_custom_call.1} parent=1 // pred_region
      %704 = dma.done [#allocation4], 256
    $region49: #{tpu_custom_call.1} parent=1 // pred_fallthru
      _
    %705 = vsyncpa [#allocation3], 1
    %706 = vsyncpa [#allocation6], 1
    %707 = vsyncpa [#allocation9], 1
    %708 = vsyncpa [#allocation4], 1

</llo_original>
